<compile_context>
chip_gen: v7x
topology: tpu7x:2x2x1
jax: 0.10.0
libtpu: 0.0.40
codegen_flags: <defaults>
</compile_context>

<pallas_src>
import functools
import math

import jax
import jax.numpy as jnp
from jax.experimental import pallas as pl
from jax.experimental.pallas import tpu as pltpu

# ------------------------- model hyper-parameters (mit_b3) -------------------------
_DIMS = [64, 128, 320, 512]
_HEADS = [1, 2, 5, 8]
_MLP_RATIOS = [4, 4, 4, 4]
_DEPTHS = [3, 4, 18, 3]
_SR = [8, 4, 2, 1]
_PATCH = [(7, 4, 3), (3, 2, 1), (3, 2, 1), (3, 2, 1)]  # (kernel, stride, pad)
_EMBED_DIM = 768
_NUM_CLASSES = 19

_TM_LINEAR = 256   # M tile for matmul kernels
_TM_LN = 512       # row tile for layernorm


def _vmem_limit_bytes():
    # Per-generation VMEM budget (leave ~25% headroom for double buffering).
    try:
        return int(pltpu.get_tpu_info().vmem_capacity_bytes * 3 // 4)
    except Exception:
        return 48 * 1024 * 1024


_VMEM_LIMIT = _vmem_limit_bytes()


def _cp(dims=None):
    return pltpu.CompilerParams(dimension_semantics=dims,
                                vmem_limit_bytes=_VMEM_LIMIT)


# ------------------------------ in-kernel math helpers -----------------------------
def _erf(x):
    # Abramowitz & Stegun 7.1.26 (|err| <= 1.5e-7); exact-erf GELU (PyTorch default)
    # approximated with supported Mosaic ops (exp/abs/select), kept in f32 on the VPU.
    a1, a2, a3, a4, a5 = 0.254829592, -0.284496736, 1.421413741, -1.453152027, 1.061405429
    p = 0.3275911
    s = jnp.where(x < 0.0, -1.0, 1.0)
    ax = jnp.abs(x)
    t = 1.0 / (1.0 + p * ax)
    poly = ((((a5 * t + a4) * t + a3) * t + a2) * t + a1) * t
    return s * (1.0 - poly * jnp.exp(-ax * ax))


def _apply_act(y, act):
    if act == "gelu":
        return 0.5 * y * (1.0 + _erf(y * (1.0 / math.sqrt(2.0))))
    if act == "relu":
        return jnp.maximum(y, 0.0)
    return y


def _pad_rows(x, m_pad):
    if m_pad == 0:
        return x
    return jnp.pad(x, ((0, m_pad), (0, 0)))


# ------------------------- fused (LN) + matmul (+residual) kernel ------------------
def _linear_kernel(*refs, act, ln_eps, has_res):
    i = 0
    x_ref = refs[i]; i += 1
    w_ref = refs[i]; i += 1
    b_ref = refs[i]; i += 1
    if ln_eps is not None:
        g_ref = refs[i]; i += 1
        gb_ref = refs[i]; i += 1
    if has_res:
        r_ref = refs[i]; i += 1
    o_ref = refs[i]

    x = x_ref[...]
    if ln_eps is not None:                      # fused LayerNorm (f32)
        mu = jnp.mean(x, axis=-1, keepdims=True)
        xc = x - mu
        var = jnp.mean(xc * xc, axis=-1, keepdims=True)
        x = xc * jax.lax.rsqrt(var + ln_eps) * g_ref[...] + gb_ref[...]
    # bf16 MXU matmul, f32 accumulation
    y = jnp.dot(x.astype(jnp.bfloat16), w_ref[...].astype(jnp.bfloat16),
                preferred_element_type=jnp.float32)
    y = y + b_ref[...]
    y = _apply_act(y, act)
    if has_res:
        y = y + r_ref[...]                      # fused residual add
    o_ref[...] = y


def _matmul_call(x, w, b, *, act="none", ln=None, residual=None):
    """y = act(LN?(x) @ w + b) + residual?.  x:(M,K)  w:(K,N)  b:(N,)."""
    M, K = x.shape
    N = w.shape[1]
    if M <= _TM_LINEAR:
        tm, grid_m, m_pad = M, 1, 0
    else:
        tm = _TM_LINEAR
        grid_m = pl.cdiv(M, tm)
        m_pad = grid_m * tm - M
    xp = _pad_rows(x, m_pad)

    args = [xp, w, b.reshape(1, N)]
    in_specs = [
        pl.BlockSpec((tm, K), lambda i: (i, 0)),
        pl.BlockSpec((K, N), lambda i: (0, 0)),
        pl.BlockSpec((1, N), lambda i: (0, 0)),
    ]
    ln_eps = None
    if ln is not None:
        g, gb, ln_eps = ln
        args += [g.reshape(1, K), gb.reshape(1, K)]
        in_specs += [pl.BlockSpec((1, K), lambda i: (0, 0)),
                     pl.BlockSpec((1, K), lambda i: (0, 0))]
    has_res = residual is not None
    if has_res:
        args.append(_pad_rows(residual, m_pad))
        in_specs.append(pl.BlockSpec((tm, N), lambda i: (i, 0)))

    out = pl.pallas_call(
        functools.partial(_linear_kernel, act=act, ln_eps=ln_eps, has_res=has_res),
        out_shape=jax.ShapeDtypeStruct((grid_m * tm, N), jnp.float32),
        grid=(grid_m,),
        in_specs=in_specs,
        out_specs=pl.BlockSpec((tm, N), lambda i: (i, 0)),
        compiler_params=_cp(("parallel",)),
        cost_estimate=pl.CostEstimate(
            flops=2 * M * K * N, transcendentals=0,
            bytes_accessed=4 * (M * K + K * N + 2 * M * N)),
    )(*args)
    return out[:M] if m_pad else out


def linear(x, w, b, act="none", residual=None):
    return _matmul_call(x, w, b, act=act, residual=residual)


def ln_linear(x, ln_g, ln_b, eps, w, b, act="none", residual=None):
    return _matmul_call(x, w, b, act=act, ln=(ln_g, ln_b, eps), residual=residual)


# ------------------------------------ LayerNorm -------------------------------------
def _layernorm_kernel(x_ref, g_ref, b_ref, o_ref, *, eps):
    x = x_ref[...]
    mu = jnp.mean(x, axis=-1, keepdims=True)
    xc = x - mu
    var = jnp.mean(xc * xc, axis=-1, keepdims=True)
    o_ref[...] = xc * jax.lax.rsqrt(var + eps) * g_ref[...] + b_ref[...]


def layernorm(x, g, b, eps):
    shape = x.shape
    C = shape[-1]
    x2 = x.reshape(-1, C)
    M = x2.shape[0]
    if M <= _TM_LN:
        tm, grid_m, m_pad = M, 1, 0
    else:
        tm = _TM_LN
        grid_m = pl.cdiv(M, tm)
        m_pad = grid_m * tm - M
    xp = _pad_rows(x2, m_pad)
    out = pl.pallas_call(
        functools.partial(_layernorm_kernel, eps=eps),
        out_shape=jax.ShapeDtypeStruct((grid_m * tm, C), jnp.float32),
        grid=(grid_m,),
        in_specs=[pl.BlockSpec((tm, C), lambda i: (i, 0)),
                  pl.BlockSpec((1, C), lambda i: (0, 0)),
                  pl.BlockSpec((1, C), lambda i: (0, 0))],
        out_specs=pl.BlockSpec((tm, C), lambda i: (i, 0)),
        compiler_params=_cp(("parallel",)),
    )(xp, g.reshape(1, C), b.reshape(1, C))
    out = out[:M] if m_pad else out
    return out.reshape(shape)


# ------------------------------------ attention --------------------------------------
def _attn_kernel(q_ref, k_ref, v_ref, o_ref, *, scale):
    q = q_ref[0].astype(jnp.bfloat16)   # (N, d)
    k = k_ref[0].astype(jnp.bfloat16)   # (Nk, d)
    v = v_ref[0].astype(jnp.bfloat16)   # (Nk, d)
    s = jax.lax.dot_general(q, k, (((1,), (1,)), ((), ())),
                            preferred_element_type=jnp.float32) * scale
    m = jnp.max(s, axis=-1, keepdims=True)
    p = jnp.exp(s - m)
    denom = jnp.sum(p, axis=-1, keepdims=True)
    o = jnp.dot(p.astype(jnp.bfloat16), v, preferred_element_type=jnp.float32)
    o_ref[0] = o * pl.reciprocal(denom, approx=True)   # EUP reciprocal (VALU slot freed)


def attention(q, k, v, scale):
    """Fused softmax(q k^T * scale) v per (batch*head).  q:(BH,N,d) k,v:(BH,Nk,d)."""
    BH, N, d = q.shape
    Nk = k.shape[1]
    return pl.pallas_call(
        functools.partial(_attn_kernel, scale=scale),
        out_shape=jax.ShapeDtypeStruct((BH, N, d), jnp.float32),
        grid=(BH,),
        in_specs=[
            pl.BlockSpec((1, N, d), lambda i: (i, 0, 0)),
            pl.BlockSpec((1, Nk, d), lambda i: (i, 0, 0)),
            pl.BlockSpec((1, Nk, d), lambda i: (i, 0, 0)),
        ],
        out_specs=pl.BlockSpec((1, N, d), lambda i: (i, 0, 0)),
        compiler_params=_cp(("parallel",)),
    )(q, k, v)


# --------------------------------- depthwise 3x3 conv --------------------------------
def _dwconv_kernel(x_ref, w_ref, b_ref, o_ref, *, H, W, act):
    w_all = w_ref[...]          # (9, Ct)
    b_all = b_ref[...]          # (1, Ct)
    ct = w_all.shape[-1]
    acc = jnp.zeros(o_ref.shape, jnp.float32)
    for dy in range(3):
        for dx in range(3):
            wk = w_all[dy * 3 + dx].reshape(1, 1, 1, ct)
            acc = acc + x_ref[:, dy:dy + H, dx:dx + W, :] * wk
    y = acc + b_all.reshape(1, 1, 1, ct)
    o_ref[...] = _apply_act(y, act)


def dwconv3x3(x_nhwc, w9c, b, act="none"):
    """Depthwise 3x3, stride 1, pad 1 (groups = C); tiled over (batch, channel blocks)."""
    B, H, W, C = x_nhwc.shape
    if C % 256 == 0:
        ct = 256
    elif C % 128 == 0:
        ct = 128
    else:
        ct = C
    nct = C // ct
    xp = jnp.pad(x_nhwc, ((0, 0), (1, 1), (1, 1), (0, 0)))
    return pl.pallas_call(
        functools.partial(_dwconv_kernel, H=H, W=W, act=act),
        out_shape=jax.ShapeDtypeStruct((B, H, W, C), jnp.float32),
        grid=(B, nct),
        in_specs=[
            pl.BlockSpec((1, H + 2, W + 2, ct), lambda bi, ci: (bi, 0, 0, ci)),
            pl.BlockSpec((9, ct), lambda bi, ci: (0, ci)),
            pl.BlockSpec((1, ct), lambda bi, ci: (0, ci)),
        ],
        out_specs=pl.BlockSpec((1, H, W, ct), lambda bi, ci: (bi, 0, 0, ci)),
        compiler_params=_cp(("parallel", "parallel")),
    )(xp, w9c, b.reshape(1, C))


# ----------------------------- conv via im2col + Pallas ------------------------------
def conv2d(x_nhwc, w_oihw, b, stride, pad):
    """Dense Conv2d: im2col (glue) + tiled Pallas matmul.  Weight is PyTorch (Cout,Cin,kh,kw)."""
    # TODO(synk): im2col patches still materialize in HBM; a fully fused patch-embed
    # kernel (halo'd row-band DMA) would remove that round trip.
    B, H, W, C = x_nhwc.shape
    Cout, Cin, kh, kw = w_oihw.shape
    assert Cin == C
    xp = jnp.pad(x_nhwc, ((0, 0), (pad, pad), (pad, pad), (0, 0))) if pad else x_nhwc
    Ho = (H + 2 * pad - kh) // stride + 1
    Wo = (W + 2 * pad - kw) // stride + 1
    cols = []
    for i in range(kh):
        for j in range(kw):
            cols.append(xp[:, i:i + stride * (Ho - 1) + 1:stride,
                           j:j + stride * (Wo - 1) + 1:stride, :])
    patches = jnp.stack(cols, axis=-1)                 # (B,Ho,Wo,C,kh*kw): (cin,i,j) order
    patches = patches.reshape(B * Ho * Wo, C * kh * kw)
    wmat = w_oihw.reshape(Cout, Cin * kh * kw).T       # (Cin*kh*kw, Cout)
    y = linear(patches, wmat, b)
    return y.reshape(B, Ho, Wo, Cout), Ho, Wo


# ------------------------------ fused SegFormer head ---------------------------------
def _head_kernel(c4_ref, c3_ref, c2_ref, c1_ref,
                 w4_ref, w3_ref, w2_ref, w1_ref, bf_ref,
                 pw_ref, pb_ref, o_ref):
    acc = jnp.dot(c4_ref[...].astype(jnp.bfloat16), w4_ref[...],
                  preferred_element_type=jnp.float32)
    acc += jnp.dot(c3_ref[...].astype(jnp.bfloat16), w3_ref[...],
                   preferred_element_type=jnp.float32)
    acc += jnp.dot(c2_ref[...].astype(jnp.bfloat16), w2_ref[...],
                   preferred_element_type=jnp.float32)
    acc += jnp.dot(c1_ref[...].astype(jnp.bfloat16), w1_ref[...],
                   preferred_element_type=jnp.float32)
    acc = acc + bf_ref[...]                 # folded BN bias
    y = jnp.maximum(acc, 0.0)               # ReLU
    o = jnp.dot(y.astype(jnp.bfloat16), pw_ref[...].astype(jnp.bfloat16),
                preferred_element_type=jnp.float32)
    o_ref[...] = o + pb_ref[...]


def head_fuse_predict(c4, c3, c2, c1, w_fold, b_fold, pred_w, pred_b):
    """relu(BN(c4@W4 + c3@W3 + c2@W2 + c1@W1)) @ pred_w + pred_b — no 4x-wide concat."""
    M, E = c4.shape
    NC = pred_w.shape[1]
    if M <= _TM_LINEAR:
        tm, grid_m, m_pad = M, 1, 0
    else:
        tm = _TM_LINEAR
        grid_m = pl.cdiv(M, tm)
        m_pad = grid_m * tm - M
    acts = tuple(_pad_rows(c, m_pad) for c in (c4, c3, c2, c1))
    ws = tuple(w_fold[i * E:(i + 1) * E].astype(jnp.bfloat16) for i in range(4))
    act_spec = pl.BlockSpec((tm, E), lambda i: (i, 0))
    w_spec = pl.BlockSpec((E, E), lambda i: (0, 0))
    out = pl.pallas_call(
        _head_kernel,
        out_shape=jax.ShapeDtypeStruct((grid_m * tm, NC), jnp.float32),
        grid=(grid_m,),
        in_specs=[act_spec] * 4 + [w_spec] * 4 + [
            pl.BlockSpec((1, E), lambda i: (0, 0)),
            pl.BlockSpec((E, NC), lambda i: (0, 0)),
            pl.BlockSpec((1, NC), lambda i: (0, 0)),
        ],
        out_specs=pl.BlockSpec((tm, NC), lambda i: (i, 0)),
        compiler_params=_cp(("parallel",)),
        cost_estimate=pl.CostEstimate(
            flops=2 * M * E * (4 * E + NC), transcendentals=0,
            bytes_accessed=4 * (4 * M * E + M * NC) + 2 * 4 * E * E),
    )(*acts, *ws, b_fold.reshape(1, E), pred_w, pred_b.reshape(1, NC))
    return out[:M] if m_pad else out


# -------------------------------- parameter creation ---------------------------------
class _Init:
    def __init__(self, seed):
        self._key = jax.random.PRNGKey(seed)

    def normal(self, shape, std=0.02):
        self._key, sub = jax.random.split(self._key)
        return std * jax.random.normal(sub, shape, jnp.float32)

    @staticmethod
    def zeros(shape):
        return jnp.zeros(shape, jnp.float32)

    @staticmethod
    def ones(shape):
        return jnp.ones(shape, jnp.float32)


def build_params(seed=0):
    init = _Init(seed)
    stages = []
    in_c = 3
    for s in range(4):
        dim = _DIMS[s]
        k, _, _ = _PATCH[s]
        hidden = dim * _MLP_RATIOS[s]
        stage = dict(
            pe_w=init.normal((dim, in_c, k, k)), pe_b=init.zeros((dim,)),
            pe_ln_g=init.ones((dim,)), pe_ln_b=init.zeros((dim,)),
            blocks=[],
            norm_g=init.ones((dim,)), norm_b=init.zeros((dim,)),
        )
        for _ in range(_DEPTHS[s]):
            blk = dict(
                ln1_g=init.ones((dim,)), ln1_b=init.zeros((dim,)),
                q_w=init.normal((dim, dim)), q_b=init.zeros((dim,)),
                kv_w=init.normal((dim, 2 * dim)), kv_b=init.zeros((2 * dim,)),
                proj_w=init.normal((dim, dim)), proj_b=init.zeros((dim,)),
                ln2_g=init.ones((dim,)), ln2_b=init.zeros((dim,)),
                fc1_w=init.normal((dim, hidden)), fc1_b=init.zeros((hidden,)),
                dw_w=init.normal((9, hidden)), dw_b=init.zeros((hidden,)),
                fc2_w=init.normal((hidden, dim)), fc2_b=init.zeros((dim,)),
            )
            if _SR[s] > 1:
                blk.update(
                    sr_w=init.normal((dim, dim, _SR[s], _SR[s])), sr_b=init.zeros((dim,)),
                    sr_ln_g=init.ones((dim,)), sr_ln_b=init.zeros((dim,)),
                )
            stage['blocks'].append(blk)
        stages.append(stage)
        in_c = dim

    head = dict(
        c_w=[init.normal((_DIMS[i], _EMBED_DIM)) for i in range(4)],
        c_b=[init.zeros((_EMBED_DIM,)) for _ in range(4)],
        fuse_w=init.normal((_EMBED_DIM, 4 * _EMBED_DIM, 1, 1)),  # Conv2d(3072,768,1,bias=False)
        bn_g=init.ones((_EMBED_DIM,)), bn_b=init.zeros((_EMBED_DIM,)),
        bn_mean=init.zeros((_EMBED_DIM,)), bn_var=init.ones((_EMBED_DIM,)),
        pred_w=init.normal((_EMBED_DIM, _NUM_CLASSES)), pred_b=init.zeros((_NUM_CLASSES,)),
    )
    return dict(stages=stages, head=head)


# ------------------------------------ forward pass -----------------------------------
def _block_forward(x, blk, H, W, heads, sr):
    B, N, C = x.shape
    d = C // heads
    x_flat = x.reshape(B * N, C)
    # --- efficient self-attention ---
    if sr > 1:
        h = layernorm(x, blk['ln1_g'], blk['ln1_b'], eps=1e-6)
        q = linear(h.reshape(B * N, C), blk['q_w'], blk['q_b'])
        himg = h.reshape(B, H, W, C)
        hsr, Hs, Ws = conv2d(himg, blk['sr_w'], blk['sr_b'], stride=sr, pad=0)
        Nk = Hs * Ws
        kv = ln_linear(hsr.reshape(B * Nk, C), blk['sr_ln_g'], blk['sr_ln_b'], 1e-5,
                       blk['kv_w'], blk['kv_b'])
    else:
        # LN1 fused into q / kv projections (no standalone LN round trip)
        q = ln_linear(x_flat, blk['ln1_g'], blk['ln1_b'], 1e-6, blk['q_w'], blk['q_b'])
        kv = ln_linear(x_flat, blk['ln1_g'], blk['ln1_b'], 1e-6, blk['kv_w'], blk['kv_b'])
        Nk = N
    q = q.reshape(B, N, heads, d)
    kv = kv.reshape(B, Nk, 2, heads, d)
    k, v = kv[:, :, 0], kv[:, :, 1]
    qh = q.transpose(0, 2, 1, 3).reshape(B * heads, N, d)
    kh = k.transpose(0, 2, 1, 3).reshape(B * heads, Nk, d)
    vh = v.transpose(0, 2, 1, 3).reshape(B * heads, Nk, d)
    o = attention(qh, kh, vh, scale=d ** -0.5)
    o = o.reshape(B, heads, N, d).transpose(0, 2, 1, 3).reshape(B * N, C)
    # proj + residual fused.  TODO(synk): DropPath(0.1)/Dropout treated as identity (eval).
    x_flat = linear(o, blk['proj_w'], blk['proj_b'], residual=x_flat)
    # --- Mix-FFN: (LN2+fc1 fused) -> dwconv3x3+GELU -> (fc2+residual fused) ---
    hidden = blk['fc1_w'].shape[1]
    f = ln_linear(x_flat, blk['ln2_g'], blk['ln2_b'], 1e-6,
                  blk['fc1_w'], blk['fc1_b']).reshape(B, H, W, hidden)
    f = dwconv3x3(f, blk['dw_w'], blk['dw_b'], act="gelu")
    x_flat = linear(f.reshape(B * N, hidden), blk['fc2_w'], blk['fc2_b'], residual=x_flat)
    return x_flat.reshape(B, N, C)


def encoder_forward(params, x_nchw):
    x = jnp.transpose(x_nchw, (0, 2, 3, 1))  # NCHW -> NHWC
    feats = []
    for s, stage in enumerate(params['stages']):
        _, stride, pad = _PATCH[s]
        y, H, W = conv2d(x, stage['pe_w'], stage['pe_b'], stride=stride, pad=pad)
        B, dim = y.shape[0], y.shape[-1]
        tok = y.reshape(B, H * W, dim)
        tok = layernorm(tok, stage['pe_ln_g'], stage['pe_ln_b'], eps=1e-5)
        for blk in stage['blocks']:
            tok = _block_forward(tok, blk, H, W, _HEADS[s], _SR[s])
        tok = layernorm(tok, stage['norm_g'], stage['norm_b'], eps=1e-6)
        feats.append((tok, H, W))
        x = tok.reshape(B, H, W, dim)
    return feats


def head_forward(head, feats):
    (c1, H1, W1), (c2, H2, W2), (c3, H3, W3), (c4, H4, W4) = feats
    B = c1.shape[0]

    def proj(c, Hc, Wc, w, b):
        Bc, Nc, Cc = c.shape
        y = linear(c.reshape(Bc * Nc, Cc), w, b).reshape(Bc, Hc, Wc, _EMBED_DIM)
        if (Hc, Wc) != (H1, W1):
            # bilinear upsample, align_corners=False (half-pixel centers) — JAX glue
            y = jax.image.resize(y, (Bc, H1, W1, _EMBED_DIM), method="bilinear")
        return y.reshape(Bc * H1 * W1, _EMBED_DIM)

    _c4 = proj(c4, H4, W4, head['c_w'][3], head['c_b'][3])
    _c3 = proj(c3, H3, W3, head['c_w'][2], head['c_b'][2])
    _c2 = proj(c2, H2, W2, head['c_w'][1], head['c_b'][1])
    _c1 = proj(c1, H1, W1, head['c_w'][0], head['c_b'][0])

    # linear_fuse: 1x1 conv (no bias) + BatchNorm(eval) + ReLU, BN folded into matmul,
    # split into 4 accumulated 768x768 matmuls and fused with the prediction conv.
    w = head['fuse_w'].reshape(_EMBED_DIM, 4 * _EMBED_DIM).T      # (3072, 768)
    scale = head['bn_g'] / jnp.sqrt(head['bn_var'] + 1e-5)
    w_fold = w * scale[None, :]
    b_fold = head['bn_b'] - head['bn_mean'] * scale
    # TODO(synk): Dropout2d(0.1) treated as identity (eval-mode semantics).
    logits = head_fuse_predict(_c4, _c3, _c2, _c1, w_fold, b_fold,
                               head['pred_w'], head['pred_b'])
    return logits.reshape(B, H1, W1, _NUM_CLASSES)


def segformer_b3_forward(params, x_nchw):
    feats = encoder_forward(params, x_nchw)
    logits = head_forward(params['head'], feats)
    B, _, H, W = x_nchw.shape
    logits = jax.image.resize(logits, (B, H, W, _NUM_CLASSES), method="bilinear")
    return jnp.transpose(logits, (0, 3, 1, 2))  # back to NCHW like the PyTorch module


if __name__ == "__main__":
    key = jax.random.PRNGKey(0)
    # Small input consistent with the module: NCHW, 3 channels, spatial 64
    # (must be a multiple of 32 so every stage / sr-ratio is valid).
    x = jax.random.normal(key, (2, 3, 64, 64), jnp.float32)
    params = build_params(seed=0)
    out = segformer_b3_forward(params, x)
    out = jax.block_until_ready(out)
    assert out.shape == (2, _NUM_CLASSES, 64, 64), out.shape
    assert bool(jnp.all(jnp.isfinite(out)))
    print("KERNEL_OK")
</pallas_src>

<mosaic_0001>
module attributes {stable_mosaic.version = 11 : i64} {
  func.func @_linear_kernel(%arg0: i32, %arg1: memref<256x147xf32, #tpu.memory_space<vmem>>, %arg2: memref<147x64xf32, #tpu.memory_space<vmem>>, %arg3: memref<1x64xf32, #tpu.memory_space<vmem>>, %arg4: memref<256x64xf32, #tpu.memory_space<vmem>>) attributes {dimension_semantics = [#tpu.dimension_semantics<parallel>], iteration_bounds = array<i64: 2>, scalar_prefetch = 0 : i64, scratch_operands = 0 : i64, tpu.core_type = #tpu.core_type<tc>, window_params = [{transform_indices = @transform_0, window_bounds = array<i64: 256, 147>}, {pipeline_mode = #tpu.pipeline_mode<synchronous>, transform_indices = @transform_1, window_bounds = array<i64: 147, 64>}, {pipeline_mode = #tpu.pipeline_mode<synchronous>, transform_indices = @transform_2, window_bounds = array<i64: 1, 64>}, {transform_indices = @transform_3, window_bounds = array<i64: 256, 64>}]} {
    %c0 = arith.constant 0 : index
    %c0_0 = arith.constant 0 : index
    %0 = vector.load %arg1[%c0, %c0_0] : memref<256x147xf32, #tpu.memory_space<vmem>>, vector<256x147xf32>
    %1 = arith.truncf %0 : vector<256x147xf32> to vector<256x147xbf16>
    %c0_1 = arith.constant 0 : index
    %c0_2 = arith.constant 0 : index
    %2 = vector.load %arg2[%c0_1, %c0_2] : memref<147x64xf32, #tpu.memory_space<vmem>>, vector<147x64xf32>
    %3 = arith.truncf %2 : vector<147x64xf32> to vector<147x64xbf16>
    %cst = arith.constant dense<0.000000e+00> : vector<256x64xf32>
    %4 = tpu.matmul %1, %3, %cst {dimension_numbers = #tpu.dot_dimension_numbers<[1], [0], [0], [1], [0, 0, 1, 1], [], []>} : vector<256x147xbf16>, vector<147x64xbf16>, vector<256x64xf32> -> vector<256x64xf32>
    %c0_3 = arith.constant 0 : index
    %c0_4 = arith.constant 0 : index
    %5 = vector.load %arg3[%c0_3, %c0_4] : memref<1x64xf32, #tpu.memory_space<vmem>>, vector<1x64xf32>
    %6 = vector.broadcast %5 : vector<1x64xf32> to vector<256x64xf32>
    %7 = arith.addf %4, %6 : vector<256x64xf32>
    %c0_5 = arith.constant 0 : index
    %c0_6 = arith.constant 0 : index
    %8 = vector.load %arg4[%c0_5, %c0_6] : memref<256x64xf32, #tpu.memory_space<vmem>>, vector<256x64xf32>
    tpu.vector_store %arg4[%c0_5, %c0_6], %7 {strides = array<i32>} : memref<256x64xf32, #tpu.memory_space<vmem>>, vector<256x64xf32>,
    return
  }
  func.func @transform_0(%arg0: i32) -> (i32, i32) {
    %c0_i32 = arith.constant 0 : i32
    %c0_i32_0 = arith.constant 0 : i32
    return %arg0, %c0_i32 : i32, i32
  }
  func.func @transform_1(%arg0: i32) -> (i32, i32) {
    %c0_i32 = arith.constant 0 : i32
    %c0_i32_0 = arith.constant 0 : i32
    %c0_i32_1 = arith.constant 0 : i32
    return %c0_i32, %c0_i32_0 : i32, i32
  }
  func.func @transform_2(%arg0: i32) -> (i32, i32) {
    %c0_i32 = arith.constant 0 : i32
    %c0_i32_0 = arith.constant 0 : i32
    %c0_i32_1 = arith.constant 0 : i32
    return %c0_i32, %c0_i32_0 : i32, i32
  }
  func.func @transform_3(%arg0: i32) -> (i32, i32) {
    %c0_i32 = arith.constant 0 : i32
    %c0_i32_0 = arith.constant 0 : i32
    return %arg0, %c0_i32 : i32, i32
  }
}

</mosaic_0001>

<llo_original>
// kernel: tpu_custom_call.1
$region0: #{tpu_custom_call.1}
  #allocation0 [shape = 'u32[]', space=smem, size = 0x4, offset = 0x4, fixed_abs, tag = 'smem constant byte address 0x4 - core index']
  #allocation1 [shape = 'u32[144,128]{1,0:T(1,128)}', space=vmem, size = 0x12000, scoped, tag = 'internal scratch']
  %s0 = inlined_call_operand.vmem [shape: f32[512,147], index: 0, kind: input, shape index: {}]
  %s1 = inlined_call_operand.vmem [shape: f32[147,64], index: 1, kind: input, shape index: {}]
  %s2 = inlined_call_operand.vmem [shape: f32[1,64], index: 2, kind: input, shape index: {}]
  %s3 = inlined_call_operand.vmem [shape: f32[512,64], index: 3, kind: output, shape index: {}]
  %s4 = sld [smem:[#allocation0]]
  $region45: #{tpu_custom_call.1} parent=0
    _
  %s6 = ssub.s32 1, %s4
  %s7 = scalar_select 0, %s6, %s4
  loop: start=0, step=1, limit=4
  $region2: #{tpu_custom_call.1} parent=0 // loop_pre_header
    _
  $region3: #{tpu_custom_call.1} parent=0 // loop_header
    %s9 = sphi 0, %s13
    %p10 = scmp.ge.s32.totalorder %s9, 4
    %s19 = sphi 0, %s21
    %s22 = sphi 0, %s19
    %s23 = sphi 0, %s22
    %s39 = sphi 0, %s23
    %s43 = sphi 0, %s43
    %s45 = sphi 0, %s43
    %s46 = sphi 0, %s45
    %s60 = sphi 0, %s46
    %s64 = sphi 0, %s64
    %s66 = sphi 0, %s64
    %s67 = sphi 0, %s66
    %s81 = sphi 0, %s67
    %s87 = sphi 0, %s89
    %s90 = sphi 0, %s87
    %s91 = sphi 0, %s90
    %s107 = sphi 0, %s91
  $region4: #{tpu_custom_call.1} parent=0 // loop_header_branch
    %12 = sbr.rel (%p10) target = $region8
  $region5: #{tpu_custom_call.1} parent=0 // loop_body
    %s14 = ssub.s32 %s9, 1
    %s15 = ssub.s32 %s9, 2
    %s16 = sadd.s32 %s9, 1
    %s17 = ssub.s32 %s9, %s16
    %p18 = scmp.eq.s32.totalorder %s17, 0
    %s20 = sadd.s32 %s19, 1
    %s21 = scalar_select %p18, %s19, %s20
    %p24 = pneg %p18
    %p25 = scmp.eq.s32.totalorder %s9, 1
    %p26 = por %p24, %p25
    %p27 = scmp.ne.s32.totalorder %s19, %s22
    %p28 = scmp.eq.s32.totalorder %s9, 0
    %p29 = por %p27, %p28
    %p30 = scmp.ne.s32.totalorder %s19, %s22
    %p31 = scmp.eq.s32.totalorder %s14, 1
    %p32 = por %p30, %p31
    %p33 = scmp.ne.s32.totalorder %s22, %s23
    %p34 = scmp.eq.s32.totalorder %s14, 0
    %p35 = por %p33, %p34
    %p36 = scmp.ne.s32.totalorder %s22, %s23
    %p37 = scmp.eq.s32.totalorder %s15, 1
    %p38 = por %p36, %p37
    %p40 = scmp.ne.s32.totalorder %s23, %s39
    %p41 = scmp.eq.s32.totalorder %s15, 0
    %p42 = por %p40, %p41
    %s44 = sadd.s32 %s43, 1
    %p47 = scmp.eq.s32.totalorder %s9, 1
    %p48 = scmp.ne.s32.totalorder %s43, %s45
    %p49 = scmp.eq.s32.totalorder %s9, 0
    %p50 = por %p48, %p49
    %p51 = scmp.ne.s32.totalorder %s43, %s45
    %p52 = scmp.eq.s32.totalorder %s14, 1
    %p53 = por %p51, %p52
    %p54 = scmp.ne.s32.totalorder %s45, %s46
    %p55 = scmp.eq.s32.totalorder %s14, 0
    %p56 = por %p54, %p55
    %p57 = scmp.ne.s32.totalorder %s45, %s46
    %p58 = scmp.eq.s32.totalorder %s15, 1
    %p59 = por %p57, %p58
    %p61 = scmp.ne.s32.totalorder %s46, %s60
    %p62 = scmp.eq.s32.totalorder %s15, 0
    %p63 = por %p61, %p62
    %s65 = sadd.s32 %s64, 1
    %p68 = scmp.eq.s32.totalorder %s9, 1
    %p69 = scmp.ne.s32.totalorder %s64, %s66
    %p70 = scmp.eq.s32.totalorder %s9, 0
    %p71 = por %p69, %p70
    %p72 = scmp.ne.s32.totalorder %s64, %s66
    %p73 = scmp.eq.s32.totalorder %s14, 1
    %p74 = por %p72, %p73
    %p75 = scmp.ne.s32.totalorder %s66, %s67
    %p76 = scmp.eq.s32.totalorder %s14, 0
    %p77 = por %p75, %p76
    %p78 = scmp.ne.s32.totalorder %s66, %s67
    %p79 = scmp.eq.s32.totalorder %s15, 1
    %p80 = por %p78, %p79
    %p82 = scmp.ne.s32.totalorder %s67, %s81
    %p83 = scmp.eq.s32.totalorder %s15, 0
    %p84 = por %p82, %p83
    %s85 = ssub.s32 %s9, %s16
    %p86 = scmp.eq.s32.totalorder %s85, 0
    %s88 = sadd.s32 %s87, 1
    %s89 = scalar_select %p86, %s87, %s88
    %p92 = pneg %p86
    %p93 = scmp.eq.s32.totalorder %s9, 1
    %p94 = por %p92, %p93
    %p95 = scmp.ne.s32.totalorder %s87, %s90
    %p96 = scmp.eq.s32.totalorder %s9, 0
    %p97 = por %p95, %p96
    %p98 = scmp.ne.s32.totalorder %s87, %s90
    %p99 = scmp.eq.s32.totalorder %s14, 1
    %p100 = por %p98, %p99
    %p101 = scmp.ne.s32.totalorder %s90, %s91
    %p102 = scmp.eq.s32.totalorder %s14, 0
    %p103 = por %p101, %p102
    %p104 = scmp.ne.s32.totalorder %s90, %s91
    %p105 = scmp.eq.s32.totalorder %s15, 1
    %p106 = por %p104, %p105
    %p108 = scmp.ne.s32.totalorder %s91, %s107
    %p109 = scmp.eq.s32.totalorder %s15, 0
    %p110 = por %p108, %p109
    %p111 = scmp.le.s32.totalorder 1, %s9
    %p112 = scmp.lt.s32.totalorder %s9, 3
    %p113 = pnand %p111, %p112
    %p114 = pneg %p113
    // Predicated region
    $region9: #{tpu_custom_call.1} parent=5 // pred_check
      _
    $region10: #{tpu_custom_call.1} parent=5 // pred_check_branch
      %116 = sbr.rel (%p113) target = $region12
    $region11: #{tpu_custom_call.1} parent=5 // pred_region
      %s117 = ssub.s32 %s9, 1
      // Predicated region
      $region13: #{tpu_custom_call.1} parent=11 // pred_check
        %p118 = pneg %p56
      $region14: #{tpu_custom_call.1} parent=11 // pred_check_branch
        %120 = sbr.rel (%p118) target = $region16
      $region15: #{tpu_custom_call.1} parent=11 // pred_region
        _
      $region16: #{tpu_custom_call.1} parent=11 // pred_fallthru
        _
      // Predicated region
      $region17: #{tpu_custom_call.1} parent=11 // pred_check
        %p121 = pneg %p77
      $region18: #{tpu_custom_call.1} parent=11 // pred_check_branch
        %123 = sbr.rel (%p121) target = $region20
      $region19: #{tpu_custom_call.1} parent=11 // pred_region
        _
      $region20: #{tpu_custom_call.1} parent=11 // pred_fallthru
        _
    $region12: #{tpu_custom_call.1} parent=5 // pred_fallthru
      _
    %p124 = scmp.lt.s32.totalorder %s9, 2
    // Predicated region
    $region21: #{tpu_custom_call.1} parent=5 // pred_check
      %p125 = pneg %p124
    $region22: #{tpu_custom_call.1} parent=5 // pred_check_branch
      %127 = sbr.rel (%p125) target = $region24
    $region23: #{tpu_custom_call.1} parent=5 // pred_region
      // Predicated region
      $region25: #{tpu_custom_call.1} parent=23 // pred_check
        %p128 = pneg %p29
      $region26: #{tpu_custom_call.1} parent=23 // pred_check_branch
        %130 = sbr.rel (%p128) target = $region28
      $region27: #{tpu_custom_call.1} parent=23 // pred_region
        %s131 = smul.u32 32, %s9
        %p132 = scmp.lt.s32.totalorder %s131, 63
        %s133 = scalar_select %p132, %s131, 63
        %s134 = smul.addr %s133, 2
        %s135 = smul.addr %s134, 8
        %s136 = scalar_lea.vmem %s0, %s135
        %s137 = smul.u32 32, %s9
      $region28: #{tpu_custom_call.1} parent=23 // pred_fallthru
        _
    $region24: #{tpu_custom_call.1} parent=5 // pred_fallthru
      _
    %p138 = scmp.le.s32.totalorder 1, %s9
    %p139 = scmp.lt.s32.totalorder %s9, 3
    %p140 = pnand %p138, %p139
    %p141 = pneg %p140
    // Predicated region
    $region29: #{tpu_custom_call.1} parent=5 // pred_check
      _
    $region30: #{tpu_custom_call.1} parent=5 // pred_check_branch
      %143 = sbr.rel (%p140) target = $region32
    $region31: #{tpu_custom_call.1} parent=5 // pred_region
      %s144 = ssub.s32 %s9, 1
      %s145 = smul.u32 32, %s14
      %p146 = scmp.lt.s32.totalorder %s145, 63
      %s147 = scalar_select %p146, %s145, 63
      %s148 = smul.addr %s147, 2
      %s149 = smul.addr %s148, 8
      %s150 = scalar_lea.vmem %s0, %s149
      %p151 = pneg %p35
      %p152 = pneg %p32
      %p153 = pneg %p56
      %p154 = pneg %p53
      %p155 = pneg %p77
      %p156 = pneg %p74
      %p157 = pneg %p103
      %p158 = pneg %p100
      %s159 = smul.u32 32, %s14
      %p160 = scmp.lt.s32.totalorder %s159, 63
      %s161 = scalar_select %p160, %s159, 63
      %s162 = smul.addr %s161, 8
      %s163 = scalar_lea.vmem %s3, %s162
      %s164 = smul.u32 32, %s14
      %p165 = scmp.lt.s32.totalorder %s164, 63
      %s166 = scalar_select %p165, %s164, 63
      %s167 = smul.addr %s166, 2
      %s168 = smul.addr %s167, 8
      %s169 = scalar_lea.vmem %s0, %s168
      %s170 = smul.u32 32, %s14
      %s171 = smul.u32 32, %s14
      %p172 = scmp.lt.s32.totalorder %s171, 63
      %s173 = scalar_select %p172, %s171, 63
      %s174 = smul.addr %s173, 8
      %s175 = scalar_lea.vmem %s3, %s174
      %s176 = smul.u32 32, %s14
      %v178 = vld [vmem:[%s169] sm:$0xff]
      %v179 = vld [vmem:[%s169 + $0x8] sm:$0xff]
      %v180 = vld [vmem:[%s169 + $0x10] sm:$0xff]
      %v181 = vld [vmem:[%s169 + $0x18] sm:$0xff]
      %v182 = vld [vmem:[%s169 + $0x20] sm:$0xff]
      %v183 = vld [vmem:[%s169 + $0x28] sm:$0xff]
      %v184 = vld [vmem:[%s169 + $0x30] sm:$0xff]
      %v185 = vld [vmem:[%s169 + $0x38] sm:$0xff]
      %v186 = vld [vmem:[%s169 + $0x40] sm:$0xff]
      %v187 = vld [vmem:[%s169 + $0x48] sm:$0xff]
      %v188 = vld [vmem:[%s169 + $0x50] sm:$0xff]
      %v189 = vld [vmem:[%s169 + $0x58] sm:$0xff]
      %v190 = vld [vmem:[%s169 + $0x60] sm:$0xff]
      %v191 = vld [vmem:[%s169 + $0x68] sm:$0xff]
      %v192 = vld [vmem:[%s169 + $0x70] sm:$0xff]
      %v193 = vld [vmem:[%s169 + $0x78] sm:$0xff]
      %v194 = vld [vmem:[%s169 + $0x80] sm:$0xff]
      %v195 = vld [vmem:[%s169 + $0x88] sm:$0xff]
      %v196 = vld [vmem:[%s169 + $0x90] sm:$0xff]
      %v197 = vld [vmem:[%s169 + $0x98] sm:$0xff]
      %v198 = vld [vmem:[%s169 + $0xa0] sm:$0xff]
      %v199 = vld [vmem:[%s169 + $0xa8] sm:$0xff]
      %v200 = vld [vmem:[%s169 + $0xb0] sm:$0xff]
      %v201 = vld [vmem:[%s169 + $0xb8] sm:$0xff]
      %v202 = vld [vmem:[%s169 + $0xc0] sm:$0xff]
      %v203 = vld [vmem:[%s169 + $0xc8] sm:$0xff]
      %v204 = vld [vmem:[%s169 + $0xd0] sm:$0xff]
      %v205 = vld [vmem:[%s169 + $0xd8] sm:$0xff]
      %v206 = vld [vmem:[%s169 + $0xe0] sm:$0xff]
      %v207 = vld [vmem:[%s169 + $0xe8] sm:$0xff]
      %v208 = vld [vmem:[%s169 + $0xf0] sm:$0xff]
      %v209 = vld [vmem:[%s169 + $0xf8] sm:$0xff]
      %v210 = vld [vmem:[%s169 + $0x100] sm:$0xff]
      %v211 = vld [vmem:[%s169 + $0x108] sm:$0xff]
      %v212 = vld [vmem:[%s169 + $0x110] sm:$0xff]
      %v213 = vld [vmem:[%s169 + $0x118] sm:$0xff]
      %v214 = vld [vmem:[%s169 + $0x120] sm:$0xff]
      %v215 = vld [vmem:[%s169 + $0x128] sm:$0xff]
      %v216 = vld [vmem:[%s169 + $0x130] sm:$0xff]
      %v217 = vld [vmem:[%s169 + $0x138] sm:$0xff]
      %v218 = vld [vmem:[%s169 + $0x140] sm:$0xff]
      %v219 = vld [vmem:[%s169 + $0x148] sm:$0xff]
      %v220 = vld [vmem:[%s169 + $0x150] sm:$0xff]
      %v221 = vld [vmem:[%s169 + $0x158] sm:$0xff]
      %v222 = vld [vmem:[%s169 + $0x160] sm:$0xff]
      %v223 = vld [vmem:[%s169 + $0x168] sm:$0xff]
      %v224 = vld [vmem:[%s169 + $0x170] sm:$0xff]
      %v225 = vld [vmem:[%s169 + $0x178] sm:$0xff]
      %v226 = vld [vmem:[%s169 + $0x180] sm:$0xff]
      %v227 = vld [vmem:[%s169 + $0x188] sm:$0xff]
      %v228 = vld [vmem:[%s169 + $0x190] sm:$0xff]
      %v229 = vld [vmem:[%s169 + $0x198] sm:$0xff]
      %v230 = vld [vmem:[%s169 + $0x1a0] sm:$0xff]
      %v231 = vld [vmem:[%s169 + $0x1a8] sm:$0xff]
      %v232 = vld [vmem:[%s169 + $0x1b0] sm:$0xff]
      %v233 = vld [vmem:[%s169 + $0x1b8] sm:$0xff]
      %v234 = vld [vmem:[%s169 + $0x1c0] sm:$0xff]
      %v235 = vld [vmem:[%s169 + $0x1c8] sm:$0xff]
      %v236 = vld [vmem:[%s169 + $0x1d0] sm:$0xff]
      %v237 = vld [vmem:[%s169 + $0x1d8] sm:$0xff]
      %v238 = vld [vmem:[%s169 + $0x1e0] sm:$0xff]
      %v239 = vld [vmem:[%s169 + $0x1e8] sm:$0xff]
      %v240 = vld [vmem:[%s169 + $0x1f0] sm:$0xff]
      %v241 = vld [vmem:[%s169 + $0x1f8] sm:$0xff]
      %v242 = vpack.c.bf16 %v180, %v178
      %v243 = vpack.c.bf16 %v181, %v179
      %v244 = vpack.c.bf16 %v184, %v182
      %v245 = vpack.c.bf16 %v185, %v183
      %v246 = vpack.c.bf16 %v188, %v186
      %v247 = vpack.c.bf16 %v189, %v187
      %v248 = vpack.c.bf16 %v192, %v190
      %v249 = vpack.c.bf16 %v193, %v191
      %v250 = vpack.c.bf16 %v196, %v194
      %v251 = vpack.c.bf16 %v197, %v195
      %v252 = vpack.c.bf16 %v200, %v198
      %v253 = vpack.c.bf16 %v201, %v199
      %v254 = vpack.c.bf16 %v204, %v202
      %v255 = vpack.c.bf16 %v205, %v203
      %v256 = vpack.c.bf16 %v208, %v206
      %v257 = vpack.c.bf16 %v209, %v207
      %v258 = vpack.c.bf16 %v212, %v210
      %v259 = vpack.c.bf16 %v213, %v211
      %v260 = vpack.c.bf16 %v216, %v214
      %v261 = vpack.c.bf16 %v217, %v215
      %v262 = vpack.c.bf16 %v220, %v218
      %v263 = vpack.c.bf16 %v221, %v219
      %v264 = vpack.c.bf16 %v224, %v222
      %v265 = vpack.c.bf16 %v225, %v223
      %v266 = vpack.c.bf16 %v228, %v226
      %v267 = vpack.c.bf16 %v229, %v227
      %v268 = vpack.c.bf16 %v232, %v230
      %v269 = vpack.c.bf16 %v233, %v231
      %v270 = vpack.c.bf16 %v236, %v234
      %v271 = vpack.c.bf16 %v237, %v235
      %v272 = vpack.c.bf16 %v240, %v238
      %v273 = vpack.c.bf16 %v241, %v239
      %v274 = vld [vmem:[%s1] sm:$0xff]
      %v275 = vld [vmem:[%s1 + $0x8] sm:$0xff]
      %v276 = vld [vmem:[%s1 + $0x10] sm:$0xff]
      %v277 = vld [vmem:[%s1 + $0x18] sm:$0xff]
      %v278 = vld [vmem:[%s1 + $0x20] sm:$0xff]
      %v279 = vld [vmem:[%s1 + $0x28] sm:$0xff]
      %v280 = vld [vmem:[%s1 + $0x30] sm:$0xff]
      %v281 = vld [vmem:[%s1 + $0x38] sm:$0xff]
      %v282 = vld [vmem:[%s1 + $0x40] sm:$0xff]
      %v283 = vld [vmem:[%s1 + $0x48] sm:$0xff]
      %v284 = vld [vmem:[%s1 + $0x50] sm:$0xff]
      %v285 = vld [vmem:[%s1 + $0x58] sm:$0xff]
      %v286 = vld [vmem:[%s1 + $0x60] sm:$0xff]
      %v287 = vld [vmem:[%s1 + $0x68] sm:$0xff]
      %v288 = vld [vmem:[%s1 + $0x70] sm:$0xff]
      %v289 = vld [vmem:[%s1 + $0x78] sm:$0xff]
      %v290 = vld [vmem:[%s1 + $0x80] sm:$0xff]
      %v291 = vld [vmem:[%s1 + $0x88] sm:$0xff]
      %v292 = vld [vmem:[%s1 + $0x90] sm:$0x7]
      %v293 = vpack.c.bf16 %v275, %v274
      %v294 = vpack.c.bf16 %v277, %v276
      %v295 = vpack.c.bf16 %v279, %v278
      %v296 = vpack.c.bf16 %v281, %v280
      %v297 = vpack.c.bf16 %v283, %v282
      %v298 = vpack.c.bf16 %v285, %v284
      %v299 = vpack.c.bf16 %v287, %v286
      %v300 = vpack.c.bf16 %v289, %v288
      %v301 = vpack.c.bf16 %v291, %v290
      %v302 = vpack.c.bf16 %v292, %v292
      %v303 = vld [vmem:[%s2] sm:$0x1]
      %v305 = vlaneseq
      %v306 = vshrl.u32 %v305, 7
      %v307 = vsub.s32 0, %v306
      %v308 = vrot.slane %v303, %v307
      %vm310 = vcmask 154624
      %v312 = vsel %vm310, %v243, 0
      %v315 = vsel %vm310, %v245, 0
      %v318 = vsel %vm310, %v247, 0
      %v321 = vsel %vm310, %v249, 0
      %v324 = vsel %vm310, %v251, 0
      %v327 = vsel %vm310, %v253, 0
      %v330 = vsel %vm310, %v255, 0
      %v333 = vsel %vm310, %v257, 0
      %v336 = vsel %vm310, %v259, 0
      %v339 = vsel %vm310, %v261, 0
      %v342 = vsel %vm310, %v263, 0
      %v345 = vsel %vm310, %v265, 0
      %v348 = vsel %vm310, %v267, 0
      %v351 = vsel %vm310, %v269, 0
      %v354 = vsel %vm310, %v271, 0
      %v357 = vsel %vm310, %v273, 0
      %vm359 = vcmask 1040384
      %vm360 = vcmask 1041408
      %v361 = vsel %vm359, 4294967295, 65535
      %v362 = vsel %vm360, %v361, 0
      %v364 = vand.u32 %v302, %v362
      %366 = vmatprep.subr.bf16.mxu0 0
      %367 = vmatpush1.bf16.msra.mxu0 %v293
      %368 = vmatprep.subr.bf16.mxu0 0
      %369 = vmatpush1.bf16.msra.mxu0 %v294
      %370 = vmatprep.subr.bf16.mxu0 0
      %371 = vmatpush1.bf16.msra.mxu0 %v295
      %372 = vmatprep.subr.bf16.mxu0 0
      %373 = vmatpush1.bf16.msra.mxu0 %v296
      %374 = vmatprep.subr.bf16.mxu0 0
      %375 = vmatpush1.bf16.msra.mxu0 %v297
      %376 = vmatprep.subr.bf16.mxu0 0
      %377 = vmatpush1.bf16.msra.mxu0 %v298
      %378 = vmatprep.subr.bf16.mxu0 0
      %379 = vmatpush1.bf16.msra.mxu0 %v299
      %380 = vmatprep.subr.bf16.mxu0 0
      %381 = vmatpush1.bf16.msra.mxu0 %v300
      %382 = vmatprep.subr.bf16.mxu0 0
      %383 = vmatpush1.bf16.msra.mxu0 %v301
      %384 = vmatprep.subr.bf16.mxu0 0
      %385 = vmatpush1.bf16.msra.mxu0 %v364
      %386 = vmatprep.subr.bf16.mxu0 0
      %387 = vmatpush1.bf16.msra.mxu0 0
      %388 = vmatprep.subr.bf16.mxu0 0
      %389 = vmatpush1.bf16.msra.mxu0 0
      %390 = vmatprep.subr.bf16.mxu0 0
      %391 = vmatpush1.bf16.msra.mxu0 0
      %392 = vmatprep.subr.bf16.mxu0 0
      %393 = vmatpush1.bf16.msra.mxu0 0
      %394 = vmatprep.subr.bf16.mxu0 0
      %395 = vmatpush1.bf16.msra.mxu0 0
      %396 = vmatprep.subr.bf16.mxu0 0
      %397 = vmatpush1.bf16.msra.mxu0 0
      %398 = vmatprep.mubr.bf16.mxu0 %v312
      %399 = vmatmul.mubr.bf16.gmra.mrb[0].mxu0 %v242
      %v400 = vpop.f32.mrb[0].mxu0
      %v401 = vadd.f32 %v308, %v400
      %v402 = vpop.f32.mrb[0].mxu0
      %v403 = vpop.f32.mrb[0].mxu0
      %v404 = vadd.f32 %v308, %v403
      %v405 = vpop.f32.mrb[0].mxu0
      %406 = vmatprep.mubr.bf16.mxu0 %v315
      %407 = vmatmul.mubr.bf16.gmra.mrb[0].mxu0 %v244
      %v408 = vpop.f32.mrb[0].mxu0
      %v409 = vadd.f32 %v308, %v408
      %v410 = vpop.f32.mrb[0].mxu0
      %v411 = vpop.f32.mrb[0].mxu0
      %v412 = vadd.f32 %v308, %v411
      %v413 = vpop.f32.mrb[0].mxu0
      %414 = vmatprep.mubr.bf16.mxu0 %v318
      %415 = vmatmul.mubr.bf16.gmra.mrb[0].mxu0 %v246
      %v416 = vpop.f32.mrb[0].mxu0
      %v417 = vadd.f32 %v308, %v416
      %v418 = vpop.f32.mrb[0].mxu0
      %v419 = vpop.f32.mrb[0].mxu0
      %v420 = vadd.f32 %v308, %v419
      %v421 = vpop.f32.mrb[0].mxu0
      %422 = vmatprep.mubr.bf16.mxu0 %v321
      %423 = vmatmul.mubr.bf16.gmra.mrb[0].mxu0 %v248
      %v424 = vpop.f32.mrb[0].mxu0
      %v425 = vadd.f32 %v308, %v424
      %v426 = vpop.f32.mrb[0].mxu0
      %v427 = vpop.f32.mrb[0].mxu0
      %v428 = vadd.f32 %v308, %v427
      %v429 = vpop.f32.mrb[0].mxu0
      %430 = vmatprep.mubr.bf16.mxu0 %v324
      %431 = vmatmul.mubr.bf16.gmra.mrb[0].mxu0 %v250
      %v432 = vpop.f32.mrb[0].mxu0
      %v433 = vadd.f32 %v308, %v432
      %v434 = vpop.f32.mrb[0].mxu0
      %v435 = vpop.f32.mrb[0].mxu0
      %v436 = vadd.f32 %v308, %v435
      %v437 = vpop.f32.mrb[0].mxu0
      %438 = vmatprep.mubr.bf16.mxu0 %v327
      %439 = vmatmul.mubr.bf16.gmra.mrb[0].mxu0 %v252
      %v440 = vpop.f32.mrb[0].mxu0
      %v441 = vadd.f32 %v308, %v440
      %v442 = vpop.f32.mrb[0].mxu0
      %v443 = vpop.f32.mrb[0].mxu0
      %v444 = vadd.f32 %v308, %v443
      %v445 = vpop.f32.mrb[0].mxu0
      %446 = vmatprep.mubr.bf16.mxu0 %v330
      %447 = vmatmul.mubr.bf16.gmra.mrb[0].mxu0 %v254
      %v448 = vpop.f32.mrb[0].mxu0
      %v449 = vadd.f32 %v308, %v448
      %v450 = vpop.f32.mrb[0].mxu0
      %v451 = vpop.f32.mrb[0].mxu0
      %v452 = vadd.f32 %v308, %v451
      %v453 = vpop.f32.mrb[0].mxu0
      %454 = vmatprep.mubr.bf16.mxu0 %v333
      %455 = vmatmul.mubr.bf16.gmra.mrb[0].mxu0 %v256
      %v456 = vpop.f32.mrb[0].mxu0
      %v457 = vadd.f32 %v308, %v456
      %v458 = vpop.f32.mrb[0].mxu0
      %v459 = vpop.f32.mrb[0].mxu0
      %v460 = vadd.f32 %v308, %v459
      %v461 = vpop.f32.mrb[0].mxu0
      %462 = vmatprep.mubr.bf16.mxu0 %v336
      %463 = vmatmul.mubr.bf16.gmra.mrb[0].mxu0 %v258
      %v464 = vpop.f32.mrb[0].mxu0
      %v465 = vadd.f32 %v308, %v464
      %v466 = vpop.f32.mrb[0].mxu0
      %v467 = vpop.f32.mrb[0].mxu0
      %v468 = vadd.f32 %v308, %v467
      %v469 = vpop.f32.mrb[0].mxu0
      %470 = vmatprep.mubr.bf16.mxu0 %v339
      %471 = vmatmul.mubr.bf16.gmra.mrb[0].mxu0 %v260
      %v472 = vpop.f32.mrb[0].mxu0
      %v473 = vadd.f32 %v308, %v472
      %v474 = vpop.f32.mrb[0].mxu0
      %v475 = vpop.f32.mrb[0].mxu0
      %v476 = vadd.f32 %v308, %v475
      %v477 = vpop.f32.mrb[0].mxu0
      %478 = vmatprep.mubr.bf16.mxu0 %v342
      %479 = vmatmul.mubr.bf16.gmra.mrb[0].mxu0 %v262
      %v480 = vpop.f32.mrb[0].mxu0
      %v481 = vadd.f32 %v308, %v480
      %v482 = vpop.f32.mrb[0].mxu0
      %v483 = vpop.f32.mrb[0].mxu0
      %v484 = vadd.f32 %v308, %v483
      %v485 = vpop.f32.mrb[0].mxu0
      %486 = vmatprep.mubr.bf16.mxu0 %v345
      %487 = vmatmul.mubr.bf16.gmra.mrb[0].mxu0 %v264
      %v488 = vpop.f32.mrb[0].mxu0
      %v489 = vadd.f32 %v308, %v488
      %v490 = vpop.f32.mrb[0].mxu0
      %v491 = vpop.f32.mrb[0].mxu0
      %v492 = vadd.f32 %v308, %v491
      %v493 = vpop.f32.mrb[0].mxu0
      %494 = vmatprep.mubr.bf16.mxu0 %v348
      %495 = vmatmul.mubr.bf16.gmra.mrb[0].mxu0 %v266
      %v496 = vpop.f32.mrb[0].mxu0
      %v497 = vadd.f32 %v308, %v496
      %v498 = vpop.f32.mrb[0].mxu0
      %v499 = vpop.f32.mrb[0].mxu0
      %v500 = vadd.f32 %v308, %v499
      %v501 = vpop.f32.mrb[0].mxu0
      %502 = vmatprep.mubr.bf16.mxu0 %v351
      %503 = vmatmul.mubr.bf16.gmra.mrb[0].mxu0 %v268
      %v504 = vpop.f32.mrb[0].mxu0
      %v505 = vadd.f32 %v308, %v504
      %v506 = vpop.f32.mrb[0].mxu0
      %v507 = vpop.f32.mrb[0].mxu0
      %v508 = vadd.f32 %v308, %v507
      %v509 = vpop.f32.mrb[0].mxu0
      %510 = vmatprep.mubr.bf16.mxu0 %v354
      %511 = vmatmul.mubr.bf16.gmra.mrb[0].mxu0 %v270
      %v512 = vpop.f32.mrb[0].mxu0
      %v513 = vadd.f32 %v308, %v512
      %v514 = vpop.f32.mrb[0].mxu0
      %v515 = vpop.f32.mrb[0].mxu0
      %v516 = vadd.f32 %v308, %v515
      %v517 = vpop.f32.mrb[0].mxu0
      %518 = vmatprep.mubr.bf16.mxu0 %v357
      %519 = vmatmul.mubr.bf16.gmra.mrb[0].mxu0 %v272
      %v520 = vpop.f32.mrb[0].mxu0
      %v521 = vadd.f32 %v308, %v520
      %v522 = vpop.f32.mrb[0].mxu0
      %v523 = vpop.f32.mrb[0].mxu0
      %v524 = vadd.f32 %v308, %v523
      %v525 = vpop.f32.mrb[0].mxu0
      %526 = vdwg.mxu0
      %vm527 = vcmask 523264
      %528 = vst.msk [vmem:[%s175] sm:$0xff] %vm527, %v401
      %529 = vst.msk [vmem:[%s175 + $0x8] sm:$0xff] %vm527, %v404
      %530 = vst.msk [vmem:[%s175 + $0x10] sm:$0xff] %vm527, %v409
      %531 = vst.msk [vmem:[%s175 + $0x18] sm:$0xff] %vm527, %v412
      %532 = vst.msk [vmem:[%s175 + $0x20] sm:$0xff] %vm527, %v417
      %533 = vst.msk [vmem:[%s175 + $0x28] sm:$0xff] %vm527, %v420
      %534 = vst.msk [vmem:[%s175 + $0x30] sm:$0xff] %vm527, %v425
      %535 = vst.msk [vmem:[%s175 + $0x38] sm:$0xff] %vm527, %v428
      %536 = vst.msk [vmem:[%s175 + $0x40] sm:$0xff] %vm527, %v433
      %537 = vst.msk [vmem:[%s175 + $0x48] sm:$0xff] %vm527, %v436
      %538 = vst.msk [vmem:[%s175 + $0x50] sm:$0xff] %vm527, %v441
      %539 = vst.msk [vmem:[%s175 + $0x58] sm:$0xff] %vm527, %v444
      %540 = vst.msk [vmem:[%s175 + $0x60] sm:$0xff] %vm527, %v449
      %541 = vst.msk [vmem:[%s175 + $0x68] sm:$0xff] %vm527, %v452
      %542 = vst.msk [vmem:[%s175 + $0x70] sm:$0xff] %vm527, %v457
      %543 = vst.msk [vmem:[%s175 + $0x78] sm:$0xff] %vm527, %v460
      %544 = vst.msk [vmem:[%s175 + $0x80] sm:$0xff] %vm527, %v465
      %545 = vst.msk [vmem:[%s175 + $0x88] sm:$0xff] %vm527, %v468
      %546 = vst.msk [vmem:[%s175 + $0x90] sm:$0xff] %vm527, %v473
      %547 = vst.msk [vmem:[%s175 + $0x98] sm:$0xff] %vm527, %v476
      %548 = vst.msk [vmem:[%s175 + $0xa0] sm:$0xff] %vm527, %v481
      %549 = vst.msk [vmem:[%s175 + $0xa8] sm:$0xff] %vm527, %v484
      %550 = vst.msk [vmem:[%s175 + $0xb0] sm:$0xff] %vm527, %v489
      %551 = vst.msk [vmem:[%s175 + $0xb8] sm:$0xff] %vm527, %v492
      %552 = vst.msk [vmem:[%s175 + $0xc0] sm:$0xff] %vm527, %v497
      %553 = vst.msk [vmem:[%s175 + $0xc8] sm:$0xff] %vm527, %v500
      %554 = vst.msk [vmem:[%s175 + $0xd0] sm:$0xff] %vm527, %v505
      %555 = vst.msk [vmem:[%s175 + $0xd8] sm:$0xff] %vm527, %v508
      %556 = vst.msk [vmem:[%s175 + $0xe0] sm:$0xff] %vm527, %v513
      %557 = vst.msk [vmem:[%s175 + $0xe8] sm:$0xff] %vm527, %v516
      %558 = vst.msk [vmem:[%s175 + $0xf0] sm:$0xff] %vm527, %v521
      %559 = vst.msk [vmem:[%s175 + $0xf8] sm:$0xff] %vm527, %v524
      %s560 = smul.u32 32, %s14
      %p561 = scmp.lt.s32.totalorder %s560, 63
      %s562 = scalar_select %p561, %s560, 63
      %s563 = smul.addr %s562, 8
      %s564 = scalar_lea.vmem %s3, %s563
      // Predicated region
      $region33: #{tpu_custom_call.1} parent=31 // pred_check
        %p565 = pneg %p100
      $region34: #{tpu_custom_call.1} parent=31 // pred_check_branch
        %567 = sbr.rel (%p565) target = $region36
      $region35: #{tpu_custom_call.1} parent=31 // pred_region
        %s568 = smul.u32 32, %s14
      $region36: #{tpu_custom_call.1} parent=31 // pred_fallthru
        _
    $region32: #{tpu_custom_call.1} parent=5 // pred_fallthru
      _
    %p569 = scmp.le.s32.totalorder 2, %s9
    // Predicated region
    $region37: #{tpu_custom_call.1} parent=5 // pred_check
      %p570 = pneg %p569
    $region38: #{tpu_custom_call.1} parent=5 // pred_check_branch
      %572 = sbr.rel (%p570) target = $region40
    $region39: #{tpu_custom_call.1} parent=5 // pred_region
      %s573 = ssub.s32 %s9, 2
      // Predicated region
      $region41: #{tpu_custom_call.1} parent=39 // pred_check
        %p574 = pneg %p106
      $region42: #{tpu_custom_call.1} parent=39 // pred_check_branch
        %576 = sbr.rel (%p574) target = $region44
      $region43: #{tpu_custom_call.1} parent=39 // pred_region
        %s577 = smul.u32 32, %s15
        %p578 = scmp.lt.s32.totalorder %s577, 63
        %s579 = scalar_select %p578, %s577, 63
        %s580 = smul.addr %s579, 8
        %s581 = scalar_lea.vmem %s3, %s580
      $region44: #{tpu_custom_call.1} parent=39 // pred_fallthru
        _
    $region40: #{tpu_custom_call.1} parent=5 // pred_fallthru
      _
  $region6: #{tpu_custom_call.1} parent=0 // loop_footer
    %s13 = sadd.s32 1, %s9
  $region7: #{tpu_custom_call.1} parent=0 // loop_footer_branch
    %8 = sbr.rel target = $region3
  $region8: #{tpu_custom_call.1} parent=0 // loop_exit
    _

</llo_original>
